<compile_context>
chip_gen: v7x
topology: tpu7x:2x2x1
jax: 0.10.0
libtpu: 0.0.40
codegen_flags: <defaults>
</compile_context>

<pallas_src>
import functools

import jax
import jax.numpy as jnp
import numpy as np
from jax.experimental import pallas as pl
from jax.experimental.pallas import tpu as pltpu


def _round_up(v, m):
    return ((v + m - 1) // m) * m


def _spatial_tiling(hw, dp, *, max_chunk_bytes=2 << 20, max_chunks_per_tile=8):
    """Pick (tile_hw, chunk) with chunk | tile_hw | hw.

    `chunk` bounds the (Dp, chunk) f32 matmul intermediate inside the kernel;
    `tile_hw` is the x DMA block (only C * tile_hw * 4 bytes per buffer, so it
    can be large -- the goal is as few grid steps as possible).
    """
    if hw % 128 != 0:
        # Block dim == full array dim is always legal; single full-extent tile.
        # TODO(synk): sub-128 chunking for huge non-128-aligned spatial extents.
        return hw, hw
    budget = max(128, (max_chunk_bytes // (4 * dp)) // 128 * 128)
    chunk = 128
    for cand in range(256, min(hw, budget) + 1, 128):
        if hw % cand == 0:
            chunk = cand
    rem = hw // chunk
    k = 1
    for cand in range(2, min(rem, max_chunks_per_tile) + 1):
        if rem % cand == 0:
            k = cand
    return chunk * k, chunk


# ---------------------------------------------------------------------------
# Kernel 1: synthetic backbone (1x1 conv + ReLU) + global average pool.
# ---------------------------------------------------------------------------
def _backbone_pool_kernel(x_ref, wct_ref, bc_ref, feat_ref, *, chunk,
                          num_chunks):
    t = pl.program_id(1)  # spatial reduction step (must stay last/sequential)

    @pl.when(t == 0)
    def _init():
        feat_ref[...] = jnp.zeros(feat_ref.shape, feat_ref.dtype)

    wct = wct_ref[...]                                  # (Dp, C) resident
    bc = bc_ref[...]                                    # (Dp, 1)

    col = None
    for c in range(num_chunks):                         # static unroll
        xc = x_ref[0, :, c * chunk:(c + 1) * chunk]     # (C, chunk), HW on lanes
        hc = jnp.dot(wct, xc,                           # (Dp, chunk) on MXU
                     preferred_element_type=jnp.float32)
        hc = jnp.maximum(hc + bc, 0.0)                  # bias + ReLU (VPU)
        s = jnp.sum(hc, axis=1, keepdims=True)          # lane reduce (XLU)
        col = s if col is None else col + s             # (Dp, 1)

    feat_ref[...] += col[None]                          # (1, Dp, 1) accumulator


# ---------------------------------------------------------------------------
# Kernel 2: pooling scale + normalization + batched classifier head.
# ---------------------------------------------------------------------------
def _head_kernel(feat_ref, mean_ref, inv_std_ref, wgt_ref, bg_ref,
                 logits_ref, proj_ref, *, inv_hw):
    feat = feat_ref[...] * inv_hw                       # global average pool
    proj = (feat - mean_ref[...]) * inv_std_ref[...]    # (N, Dp)
    proj_ref[...] = proj
    logits_ref[...] = (
        jnp.dot(proj, wgt_ref[...], preferred_element_type=jnp.float32)
        + bg_ref[...])                                  # (N, Kp) batched MXU


def standard_model_forward(x_nchw, params, *, lane_multiple=128):
    """Forward pass.  x_nchw: (N, C, H, W) float32, PyTorch layout.

    lane_multiple=128 is correct on all generations; 256 slightly improves MXU
    fill on v6e/v7x (2x256^2 MXU) at production D/K sizes.
    """
    x = x_nchw.astype(jnp.float32)
    N, C, H, W = x.shape
    HW = H * W
    x_flat = x.reshape(N, C, HW)        # free contiguous reshape (no transpose)

    w_conv = params["w_conv"].astype(jnp.float32)       # (C, D)
    b_conv = params["b_conv"].astype(jnp.float32)       # (D,)
    W_g = params["W_g"].astype(jnp.float32)             # (K, D)
    b_g = params["b_g"].astype(jnp.float32)             # (K,)
    proj_mean = params["proj_mean"].astype(jnp.float32)  # (D,)
    proj_std = params["proj_std"].astype(jnp.float32)    # (D,)

    D = w_conv.shape[1]
    K = W_g.shape[0]
    Dp = _round_up(D, lane_multiple)
    Kp = _round_up(K, lane_multiple)

    tile_hw, chunk = _spatial_tiling(HW, Dp)
    assert HW % tile_hw == 0 and tile_hw % chunk == 0
    num_hw_tiles = HW // tile_hw
    num_chunks = tile_hw // chunk

    # --- one-time parameter layout plumbing (tiny tensors) -----------------
    wct_p = jnp.pad(w_conv.T, ((0, Dp - D), (0, 0)))                 # (Dp, C)
    bc_p = jnp.pad(b_conv.reshape(D, 1), ((0, Dp - D), (0, 0)))      # (Dp, 1)
    mean_p = jnp.pad(proj_mean.reshape(1, D), ((0, 0), (0, Dp - D)))
    inv_std_p = jnp.pad((1.0 / proj_std).reshape(1, D),
                        ((0, 0), (0, Dp - D)), constant_values=1.0)
    wgt_p = jnp.pad(W_g.T, ((0, Dp - D), (0, Kp - K)))               # (Dp, Kp)
    bg_p = jnp.pad(b_g.reshape(1, K), ((0, 0), (0, Kp - K)))         # (1, Kp)

    const2 = lambda n, t: (0, 0)   # resident parameter blocks

    # --- kernel 1: backbone + pool ------------------------------------------
    backbone = pl.pallas_call(
        functools.partial(_backbone_pool_kernel, chunk=chunk,
                          num_chunks=num_chunks),
        out_shape=jax.ShapeDtypeStruct((N, Dp, 1), jnp.float32),
        grid_spec=pltpu.PrefetchScalarGridSpec(
            num_scalar_prefetch=0,
            grid=(N, num_hw_tiles),      # (batch: parallel, spatial: reduce)
            in_specs=[
                pl.BlockSpec((1, C, tile_hw), lambda n, t: (n, 0, t)),  # x
                pl.BlockSpec((Dp, C), const2),                          # w^T
                pl.BlockSpec((Dp, 1), const2),                          # bias
            ],
            out_specs=pl.BlockSpec((1, Dp, 1), lambda n, t: (n, 0, 0)),
        ),
        compiler_params=pltpu.CompilerParams(
            # Spatial axis MUST stay last + "arbitrary": the output block is
            # the running accumulator across it.
            dimension_semantics=("parallel", "arbitrary")),
    )
    feat_sum = backbone(x_flat, wct_p, bc_p)            # (N, Dp, 1)
    feat_sum = feat_sum.reshape(N, Dp)                  # free (row-major) reshape

    # --- kernel 2: normalization + batched head -----------------------------
    const1 = lambda i: (0, 0)
    head = pl.pallas_call(
        functools.partial(_head_kernel, inv_hw=1.0 / float(HW)),
        out_shape=(jax.ShapeDtypeStruct((N, Kp), jnp.float32),
                   jax.ShapeDtypeStruct((N, Dp), jnp.float32)),
        grid_spec=pltpu.PrefetchScalarGridSpec(
            num_scalar_prefetch=0,
            grid=(1,),
            in_specs=[
                pl.BlockSpec((N, Dp), const1),   # pooled feature sums
                pl.BlockSpec((1, Dp), const1),   # proj_mean
                pl.BlockSpec((1, Dp), const1),   # 1 / proj_std
                pl.BlockSpec((Dp, Kp), const1),  # W_g^T (pre-transposed)
                pl.BlockSpec((1, Kp), const1),   # b_g
            ],
            out_specs=(pl.BlockSpec((N, Kp), const1),
                       pl.BlockSpec((N, Dp), const1)),
        ),
        compiler_params=pltpu.CompilerParams(
            dimension_semantics=("arbitrary",)),
    )
    logits_p, proj_p = head(feat_sum, mean_p, inv_std_p, wgt_p, bg_p)

    # Slice the lane padding back off (tiny outputs).
    return logits_p[:, :K], proj_p[:, :D]


# ---------------------------------------------------------------------------
# Reference (plain JAX) for a correctness sanity check.
# ---------------------------------------------------------------------------
def reference_forward(x_nchw, params):
    N, C, H, W = x_nchw.shape
    xf = x_nchw.reshape(N, C, H * W)
    h = (jnp.einsum("cd,ncs->nds", params["w_conv"], xf)
         + params["b_conv"][None, :, None])
    feat = jnp.mean(jnp.maximum(h, 0.0), axis=2)                 # (N, D)
    proj_c = (feat - params["proj_mean"]) / params["proj_std"]
    logits = proj_c @ params["W_g"].T + params["b_g"]
    return logits, proj_c


if __name__ == "__main__":
    # Small shapes consistent with the module's forward:
    #   input x: (N=2, C=4, H=16, W=16); backbone features D=32; classes K=8.
    N, C, H, W = 2, 4, 16, 16
    D, K = 32, 8

    key = jax.random.PRNGKey(0)
    k_x, k_wc, k_bc, k_wg, k_bg, k_mu, k_sd = jax.random.split(key, 7)

    x = jax.random.normal(k_x, (N, C, H, W), dtype=jnp.float32)

    params = {
        # synthetic backbone parameters (deterministic init)
        "w_conv": 0.1 * jax.random.normal(k_wc, (C, D), dtype=jnp.float32),
        "b_conv": 0.05 * jax.random.normal(k_bc, (D,), dtype=jnp.float32),
        # final linear layer: W_g (K, D), b_g (K,)
        "W_g": 0.1 * jax.random.normal(k_wg, (K, D), dtype=jnp.float32),
        "b_g": 0.05 * jax.random.normal(k_bg, (K,), dtype=jnp.float32),
        # projection statistics
        "proj_mean": 0.1 * jax.random.normal(k_mu, (D,), dtype=jnp.float32),
        "proj_std": 0.5 + jnp.abs(jax.random.normal(k_sd, (D,),
                                                    dtype=jnp.float32)),
    }

    logits, proj_c = standard_model_forward(x, params)
    jax.block_until_ready((logits, proj_c))

    ref_logits, ref_proj = reference_forward(x, params)
    np.testing.assert_allclose(np.asarray(logits), np.asarray(ref_logits),
                               rtol=1e-5, atol=1e-5)
    np.testing.assert_allclose(np.asarray(proj_c), np.asarray(ref_proj),
                               rtol=1e-5, atol=1e-5)

    assert logits.shape == (N, K) and proj_c.shape == (N, D)
    print("KERNEL_OK")
</pallas_src>

<mosaic_0001>
module attributes {stable_mosaic.version = 11 : i64} {
  func.func @_backbone_pool_kernel(%arg0: i32, %arg1: i32, %arg2: memref<1x4x256xf32, #tpu.memory_space<vmem>>, %arg3: memref<128x4xf32, #tpu.memory_space<vmem>>, %arg4: memref<128x1xf32, #tpu.memory_space<vmem>>, %arg5: memref<1x128x1xf32, #tpu.memory_space<vmem>>) attributes {dimension_semantics = [#tpu.dimension_semantics<parallel>, #tpu.dimension_semantics<arbitrary>], iteration_bounds = array<i64: 2, 1>, scalar_prefetch = 0 : i64, scratch_operands = 0 : i64, tpu.core_type = #tpu.core_type<tc>, window_params = [{transform_indices = @transform_0, window_bounds = array<i64: 1, 4, 256>}, {pipeline_mode = #tpu.pipeline_mode<synchronous>, transform_indices = @transform_1, window_bounds = array<i64: 128, 4>}, {pipeline_mode = #tpu.pipeline_mode<synchronous>, transform_indices = @transform_2, window_bounds = array<i64: 128, 1>}, {transform_indices = @transform_3, window_bounds = array<i64: 1, 128, 1>}]} {
    %c0_i32 = arith.constant 0 : i32
    %0 = arith.cmpi eq, %arg1, %c0_i32 : i32
    %1 = arith.extui %0 : i1 to i32
    %c0_i32_0 = arith.constant 0 : i32
    %2 = arith.cmpi ne, %1, %c0_i32_0 : i32
    scf.if %2 {
      %cst_15 = arith.constant 0.000000e+00 : f32
      %18 = vector.broadcast %cst_15 : f32 to vector<1x128x1xf32>
      %c0_16 = arith.constant 0 : index
      %c0_17 = arith.constant 0 : index
      %c0_18 = arith.constant 0 : index
      %19 = vector.load %arg5[%c0_16, %c0_17, %c0_18] : memref<1x128x1xf32, #tpu.memory_space<vmem>>, vector<1x128x1xf32>
      tpu.vector_store %arg5[%c0_16, %c0_17, %c0_18], %18 {strides = array<i32>} : memref<1x128x1xf32, #tpu.memory_space<vmem>>, vector<1x128x1xf32>,
    } else {
    }
    %c0 = arith.constant 0 : index
    %c0_1 = arith.constant 0 : index
    %3 = vector.load %arg3[%c0, %c0_1] : memref<128x4xf32, #tpu.memory_space<vmem>>, vector<128x4xf32>
    %c0_2 = arith.constant 0 : index
    %c0_3 = arith.constant 0 : index
    %4 = vector.load %arg4[%c0_2, %c0_3] : memref<128x1xf32, #tpu.memory_space<vmem>>, vector<128x1xf32>
    %c0_4 = arith.constant 0 : index
    %c0_5 = arith.constant 0 : index
    %c0_6 = arith.constant 0 : index
    %5 = vector.load %arg2[%c0_4, %c0_5, %c0_6] : memref<1x4x256xf32, #tpu.memory_space<vmem>>, vector<1x4x256xf32>
    %6 = vector.shape_cast %5 : vector<1x4x256xf32> to vector<4x256xf32>
    %cst = arith.constant dense<0.000000e+00> : vector<128x256xf32>
    %7 = tpu.matmul %3, %6, %cst {dimension_numbers = #tpu.dot_dimension_numbers<[1], [0], [0], [1], [0, 0, 1, 1], [], []>} : vector<128x4xf32>, vector<4x256xf32>, vector<128x256xf32> -> vector<128x256xf32>
    %8 = vector.broadcast %4 : vector<128x1xf32> to vector<128x256xf32>
    %9 = arith.addf %7, %8 : vector<128x256xf32>
    %cst_7 = arith.constant 0.000000e+00 : f32
    %10 = vector.broadcast %cst_7 : f32 to vector<128x256xf32>
    %11 = arith.maximumf %9, %10 : vector<128x256xf32>
    %cst_8 = arith.constant dense<0.000000e+00> : vector<128xf32>
    %12 = vector.multi_reduction <add>, %11, %cst_8 [1] : vector<128x256xf32> to vector<128xf32>
    %13 = vector.shape_cast %12 : vector<128xf32> to vector<128x1xf32>
    %c0_9 = arith.constant 0 : index
    %c0_10 = arith.constant 0 : index
    %c0_11 = arith.constant 0 : index
    %14 = vector.load %arg5[%c0_9, %c0_10, %c0_11] : memref<1x128x1xf32, #tpu.memory_space<vmem>>, vector<1x128x1xf32>
    %15 = vector.shape_cast %13 : vector<128x1xf32> to vector<1x128x1xf32>
    %16 = arith.addf %14, %15 : vector<1x128x1xf32>
    %c0_12 = arith.constant 0 : index
    %c0_13 = arith.constant 0 : index
    %c0_14 = arith.constant 0 : index
    %17 = vector.load %arg5[%c0_12, %c0_13, %c0_14] : memref<1x128x1xf32, #tpu.memory_space<vmem>>, vector<1x128x1xf32>
    tpu.vector_store %arg5[%c0_12, %c0_13, %c0_14], %16 {strides = array<i32>} : memref<1x128x1xf32, #tpu.memory_space<vmem>>, vector<1x128x1xf32>,
    return
  }
  func.func @transform_0(%arg0: i32, %arg1: i32) -> (i32, i32, i32) {
    %c0_i32 = arith.constant 0 : i32
    %c0_i32_0 = arith.constant 0 : i32
    return %arg0, %c0_i32, %arg1 : i32, i32, i32
  }
  func.func @transform_1(%arg0: i32, %arg1: i32) -> (i32, i32) {
    %c0_i32 = arith.constant 0 : i32
    %c0_i32_0 = arith.constant 0 : i32
    %c0_i32_1 = arith.constant 0 : i32
    return %c0_i32, %c0_i32_0 : i32, i32
  }
  func.func @transform_2(%arg0: i32, %arg1: i32) -> (i32, i32) {
    %c0_i32 = arith.constant 0 : i32
    %c0_i32_0 = arith.constant 0 : i32
    %c0_i32_1 = arith.constant 0 : i32
    return %c0_i32, %c0_i32_0 : i32, i32
  }
  func.func @transform_3(%arg0: i32, %arg1: i32) -> (i32, i32, i32) {
    %c0_i32 = arith.constant 0 : i32
    %c0_i32_0 = arith.constant 0 : i32
    %c0_i32_1 = arith.constant 0 : i32
    return %arg0, %c0_i32, %c0_i32_0 : i32, i32, i32
  }
}

</mosaic_0001>

<llo_original>
// kernel: tpu_custom_call.1
$region0: #{tpu_custom_call.1}
  #allocation0 [shape = 'u32[]', space=smem, size = 0x4, offset = 0x4, fixed_abs, tag = 'smem constant byte address 0x4 - core index']
  #allocation1 [shape = 'u32[144,128]{1,0:T(1,128)}', space=vmem, size = 0x12000, scoped, tag = 'internal scratch']
  %s0 = inlined_call_operand.vmem [shape: f32[2,4,256], index: 0, kind: input, shape index: {}]
  %s1 = inlined_call_operand.vmem [shape: f32[128,4], index: 1, kind: input, shape index: {}]
  %s2 = inlined_call_operand.vmem [shape: f32[128,1], index: 2, kind: input, shape index: {}]
  %s3 = inlined_call_operand.vmem [shape: f32[2,128,1], index: 3, kind: output, shape index: {}]
  %s4 = sld [smem:[#allocation0]]
  $region49: #{tpu_custom_call.1} parent=0
    _
  %s6 = ssub.s32 1, %s4
  %s7 = scalar_select 0, %s6, %s4
  loop: start=0, step=1, limit=4
  $region2: #{tpu_custom_call.1} parent=0 // loop_pre_header
    _
  $region3: #{tpu_custom_call.1} parent=0 // loop_header
    %s9 = sphi 0, %s13
    %p10 = scmp.ge.s32.totalorder %s9, 4
    %s16 = sphi 0, %s28
    %s17 = sphi 0, %s24
    %s18 = sphi 0, %s16
    %s19 = sphi 0, %s17
    %s20 = sphi 0, %s18
    %s21 = sphi 0, %s19
    %s33 = sphi 0, %s35
    %s36 = sphi 0, %s33
    %s37 = sphi 0, %s36
    %s53 = sphi 0, %s37
    %s57 = sphi 0, %s57
    %s59 = sphi 0, %s57
    %s60 = sphi 0, %s59
    %s74 = sphi 0, %s60
    %s78 = sphi 0, %s78
    %s80 = sphi 0, %s78
    %s81 = sphi 0, %s80
    %s95 = sphi 0, %s81
    %s101 = sphi 0, %s103
    %s104 = sphi 0, %s101
    %s105 = sphi 0, %s104
    %s121 = sphi 0, %s105
  $region4: #{tpu_custom_call.1} parent=0 // loop_header_branch
    %12 = sbr.rel (%p10) target = $region8
  $region5: #{tpu_custom_call.1} parent=0 // loop_body
    %s14 = ssub.s32 %s9, 1
    %s15 = ssub.s32 %s9, 2
    %s22 = sadd.s32 1, %s17
    %p23 = scmp.ge.s32.totalorder %s22, 1
    %s24 = scalar_select %p23, 0, %s22
    %s25 = sadd.s32 1, %s16
    %s26 = scalar_select %p23, %s25, %s16
    %p27 = scmp.ge.s32.totalorder %s26, 2
    %s28 = scalar_select %p27, 0, %s26
    %s29 = ssub.s32 %s16, %s28
    %s30 = ssub.s32 %s17, %s24
    %s31 = sor.u32 %s29, %s30
    %p32 = scmp.eq.s32.totalorder %s31, 0
    %s34 = sadd.s32 %s33, 1
    %s35 = scalar_select %p32, %s33, %s34
    %p38 = pneg %p32
    %p39 = scmp.eq.s32.totalorder %s9, 1
    %p40 = por %p38, %p39
    %p41 = scmp.ne.s32.totalorder %s33, %s36
    %p42 = scmp.eq.s32.totalorder %s9, 0
    %p43 = por %p41, %p42
    %p44 = scmp.ne.s32.totalorder %s33, %s36
    %p45 = scmp.eq.s32.totalorder %s14, 1
    %p46 = por %p44, %p45
    %p47 = scmp.ne.s32.totalorder %s36, %s37
    %p48 = scmp.eq.s32.totalorder %s14, 0
    %p49 = por %p47, %p48
    %p50 = scmp.ne.s32.totalorder %s36, %s37
    %p51 = scmp.eq.s32.totalorder %s15, 1
    %p52 = por %p50, %p51
    %p54 = scmp.ne.s32.totalorder %s37, %s53
    %p55 = scmp.eq.s32.totalorder %s15, 0
    %p56 = por %p54, %p55
    %s58 = sadd.s32 %s57, 1
    %p61 = scmp.eq.s32.totalorder %s9, 1
    %p62 = scmp.ne.s32.totalorder %s57, %s59
    %p63 = scmp.eq.s32.totalorder %s9, 0
    %p64 = por %p62, %p63
    %p65 = scmp.ne.s32.totalorder %s57, %s59
    %p66 = scmp.eq.s32.totalorder %s14, 1
    %p67 = por %p65, %p66
    %p68 = scmp.ne.s32.totalorder %s59, %s60
    %p69 = scmp.eq.s32.totalorder %s14, 0
    %p70 = por %p68, %p69
    %p71 = scmp.ne.s32.totalorder %s59, %s60
    %p72 = scmp.eq.s32.totalorder %s15, 1
    %p73 = por %p71, %p72
    %p75 = scmp.ne.s32.totalorder %s60, %s74
    %p76 = scmp.eq.s32.totalorder %s15, 0
    %p77 = por %p75, %p76
    %s79 = sadd.s32 %s78, 1
    %p82 = scmp.eq.s32.totalorder %s9, 1
    %p83 = scmp.ne.s32.totalorder %s78, %s80
    %p84 = scmp.eq.s32.totalorder %s9, 0
    %p85 = por %p83, %p84
    %p86 = scmp.ne.s32.totalorder %s78, %s80
    %p87 = scmp.eq.s32.totalorder %s14, 1
    %p88 = por %p86, %p87
    %p89 = scmp.ne.s32.totalorder %s80, %s81
    %p90 = scmp.eq.s32.totalorder %s14, 0
    %p91 = por %p89, %p90
    %p92 = scmp.ne.s32.totalorder %s80, %s81
    %p93 = scmp.eq.s32.totalorder %s15, 1
    %p94 = por %p92, %p93
    %p96 = scmp.ne.s32.totalorder %s81, %s95
    %p97 = scmp.eq.s32.totalorder %s15, 0
    %p98 = por %p96, %p97
    %s99 = ssub.s32 %s16, %s28
    %p100 = scmp.eq.s32.totalorder %s99, 0
    %s102 = sadd.s32 %s101, 1
    %s103 = scalar_select %p100, %s101, %s102
    %p106 = pneg %p100
    %p107 = scmp.eq.s32.totalorder %s9, 1
    %p108 = por %p106, %p107
    %p109 = scmp.ne.s32.totalorder %s101, %s104
    %p110 = scmp.eq.s32.totalorder %s9, 0
    %p111 = por %p109, %p110
    %p112 = scmp.ne.s32.totalorder %s101, %s104
    %p113 = scmp.eq.s32.totalorder %s14, 1
    %p114 = por %p112, %p113
    %p115 = scmp.ne.s32.totalorder %s104, %s105
    %p116 = scmp.eq.s32.totalorder %s14, 0
    %p117 = por %p115, %p116
    %p118 = scmp.ne.s32.totalorder %s104, %s105
    %p119 = scmp.eq.s32.totalorder %s15, 1
    %p120 = por %p118, %p119
    %p122 = scmp.ne.s32.totalorder %s105, %s121
    %p123 = scmp.eq.s32.totalorder %s15, 0
    %p124 = por %p122, %p123
    %p125 = scmp.le.s32.totalorder 1, %s9
    %p126 = scmp.lt.s32.totalorder %s9, 3
    %p127 = pnand %p125, %p126
    %p128 = pneg %p127
    // Predicated region
    $region9: #{tpu_custom_call.1} parent=5 // pred_check
      _
    $region10: #{tpu_custom_call.1} parent=5 // pred_check_branch
      %130 = sbr.rel (%p127) target = $region12
    $region11: #{tpu_custom_call.1} parent=5 // pred_region
      %s131 = ssub.s32 %s9, 1
      // Predicated region
      $region13: #{tpu_custom_call.1} parent=11 // pred_check
        %p132 = pneg %p70
      $region14: #{tpu_custom_call.1} parent=11 // pred_check_branch
        %134 = sbr.rel (%p132) target = $region16
      $region15: #{tpu_custom_call.1} parent=11 // pred_region
        _
      $region16: #{tpu_custom_call.1} parent=11 // pred_fallthru
        _
      // Predicated region
      $region17: #{tpu_custom_call.1} parent=11 // pred_check
        %p135 = pneg %p91
      $region18: #{tpu_custom_call.1} parent=11 // pred_check_branch
        %137 = sbr.rel (%p135) target = $region20
      $region19: #{tpu_custom_call.1} parent=11 // pred_region
        _
      $region20: #{tpu_custom_call.1} parent=11 // pred_fallthru
        _
    $region12: #{tpu_custom_call.1} parent=5 // pred_fallthru
      _
    %p138 = scmp.lt.s32.totalorder %s9, 2
    // Predicated region
    $region21: #{tpu_custom_call.1} parent=5 // pred_check
      %p139 = pneg %p138
    $region22: #{tpu_custom_call.1} parent=5 // pred_check_branch
      %141 = sbr.rel (%p139) target = $region24
    $region23: #{tpu_custom_call.1} parent=5 // pred_region
      // Predicated region
      $region25: #{tpu_custom_call.1} parent=23 // pred_check
        %p142 = pneg %p43
      $region26: #{tpu_custom_call.1} parent=23 // pred_check_branch
        %144 = sbr.rel (%p142) target = $region28
      $region27: #{tpu_custom_call.1} parent=23 // pred_region
        %s145 = smul.u32 2, %s17
        %p146 = scmp.lt.s32.totalorder %s16, 1
        %s147 = scalar_select %p146, %s16, 1
        %p148 = scmp.lt.s32.totalorder %s145, 1
        %s149 = scalar_select %p148, %s145, 1
        %s150 = smul.addr %s147, 2
        %s151 = sadd.s32 %s149, %s150
        %s152 = smul.addr %s151, 4
        %s153 = scalar_lea.vmem %s0, %s152
        %s154 = smul.u32 2, %s17
      $region28: #{tpu_custom_call.1} parent=23 // pred_fallthru
        _
    $region24: #{tpu_custom_call.1} parent=5 // pred_fallthru
      _
    %p155 = scmp.le.s32.totalorder 1, %s9
    %p156 = scmp.lt.s32.totalorder %s9, 3
    %p157 = pnand %p155, %p156
    %p158 = pneg %p157
    // Predicated region
    $region29: #{tpu_custom_call.1} parent=5 // pred_check
      _
    $region30: #{tpu_custom_call.1} parent=5 // pred_check_branch
      %160 = sbr.rel (%p157) target = $region32
    $region31: #{tpu_custom_call.1} parent=5 // pred_region
      %s161 = ssub.s32 %s9, 1
      %s162 = smul.u32 2, %s19
      %p163 = scmp.lt.s32.totalorder %s18, 1
      %s164 = scalar_select %p163, %s18, 1
      %p165 = scmp.lt.s32.totalorder %s162, 1
      %s166 = scalar_select %p165, %s162, 1
      %s167 = smul.addr %s164, 2
      %s168 = sadd.s32 %s166, %s167
      %s169 = smul.addr %s168, 4
      %s170 = scalar_lea.vmem %s0, %s169
      %p171 = pneg %p49
      %p172 = pneg %p46
      %p173 = pneg %p70
      %p174 = pneg %p67
      %p175 = pneg %p91
      %p176 = pneg %p88
      %p177 = pneg %p117
      %p178 = pneg %p114
      %p179 = scmp.lt.s32.totalorder %s18, 1
      %s180 = scalar_select %p179, %s18, 1
      %s181 = smul.addr %s180, 16
      %s182 = smul.addr %s181, 8
      %s183 = scalar_lea.vmem %s3, %s182
      %s184 = smul.u32 2, %s19
      %p185 = scmp.lt.s32.totalorder %s18, 1
      %s186 = scalar_select %p185, %s18, 1
      %p187 = scmp.lt.s32.totalorder %s184, 1
      %s188 = scalar_select %p187, %s184, 1
      %s189 = smul.addr %s186, 2
      %s190 = sadd.s32 %s188, %s189
      %s191 = smul.addr %s190, 4
      %s192 = scalar_lea.vmem %s0, %s191
      %s193 = smul.u32 2, %s19
      %p194 = scmp.lt.s32.totalorder %s18, 1
      %s195 = scalar_select %p194, %s18, 1
      %s196 = smul.addr %s195, 16
      %s197 = smul.addr %s196, 8
      %s198 = scalar_lea.vmem %s3, %s197
      %p199 = scmp.eq.s32.totalorder %s19, 0
      // Predicated region
      $region33: #{tpu_custom_call.1} parent=31 // pred_check
        %p200 = pneg %p199
      $region34: #{tpu_custom_call.1} parent=31 // pred_check_branch
        %202 = sbr.rel (%p200) target = $region36
      $region35: #{tpu_custom_call.1} parent=31 // pred_region
        %vm203 = vcmask 7168
        %204 = vst.msk [vmem:[%s198] sm:$0xff] %vm203, 0.0
        %205 = vst.msk [vmem:[%s198 + $0x8] sm:$0xff] %vm203, 0.0
        %206 = vst.msk [vmem:[%s198 + $0x10] sm:$0xff] %vm203, 0.0
        %207 = vst.msk [vmem:[%s198 + $0x18] sm:$0xff] %vm203, 0.0
        %208 = vst.msk [vmem:[%s198 + $0x20] sm:$0xff] %vm203, 0.0
        %209 = vst.msk [vmem:[%s198 + $0x28] sm:$0xff] %vm203, 0.0
        %210 = vst.msk [vmem:[%s198 + $0x30] sm:$0xff] %vm203, 0.0
        %211 = vst.msk [vmem:[%s198 + $0x38] sm:$0xff] %vm203, 0.0
        %212 = vst.msk [vmem:[%s198 + $0x40] sm:$0xff] %vm203, 0.0
        %213 = vst.msk [vmem:[%s198 + $0x48] sm:$0xff] %vm203, 0.0
        %214 = vst.msk [vmem:[%s198 + $0x50] sm:$0xff] %vm203, 0.0
        %215 = vst.msk [vmem:[%s198 + $0x58] sm:$0xff] %vm203, 0.0
        %216 = vst.msk [vmem:[%s198 + $0x60] sm:$0xff] %vm203, 0.0
        %217 = vst.msk [vmem:[%s198 + $0x68] sm:$0xff] %vm203, 0.0
        %218 = vst.msk [vmem:[%s198 + $0x70] sm:$0xff] %vm203, 0.0
        %219 = vst.msk [vmem:[%s198 + $0x78] sm:$0xff] %vm203, 0.0
      $region36: #{tpu_custom_call.1} parent=31 // pred_fallthru
        _
      %v220 = vld [vmem:[%s1] sm:$0xff]
      %v221 = vld [vmem:[%s1 + $0x8] sm:$0xff]
      %v222 = vld [vmem:[%s1 + $0x10] sm:$0xff]
      %v223 = vld [vmem:[%s1 + $0x18] sm:$0xff]
      %v224 = vld [vmem:[%s1 + $0x20] sm:$0xff]
      %v225 = vld [vmem:[%s1 + $0x28] sm:$0xff]
      %v226 = vld [vmem:[%s1 + $0x30] sm:$0xff]
      %v227 = vld [vmem:[%s1 + $0x38] sm:$0xff]
      %v228 = vld [vmem:[%s1 + $0x40] sm:$0xff]
      %v229 = vld [vmem:[%s1 + $0x48] sm:$0xff]
      %v230 = vld [vmem:[%s1 + $0x50] sm:$0xff]
      %v231 = vld [vmem:[%s1 + $0x58] sm:$0xff]
      %v232 = vld [vmem:[%s1 + $0x60] sm:$0xff]
      %v233 = vld [vmem:[%s1 + $0x68] sm:$0xff]
      %v234 = vld [vmem:[%s1 + $0x70] sm:$0xff]
      %v235 = vld [vmem:[%s1 + $0x78] sm:$0xff]
      %v236 = vld [vmem:[%s2] sm:$0xff]
      %v237 = vld [vmem:[%s2 + $0x8] sm:$0xff]
      %v238 = vld [vmem:[%s2 + $0x10] sm:$0xff]
      %v239 = vld [vmem:[%s2 + $0x18] sm:$0xff]
      %v240 = vld [vmem:[%s2 + $0x20] sm:$0xff]
      %v241 = vld [vmem:[%s2 + $0x28] sm:$0xff]
      %v242 = vld [vmem:[%s2 + $0x30] sm:$0xff]
      %v243 = vld [vmem:[%s2 + $0x38] sm:$0xff]
      %v244 = vld [vmem:[%s2 + $0x40] sm:$0xff]
      %v245 = vld [vmem:[%s2 + $0x48] sm:$0xff]
      %v246 = vld [vmem:[%s2 + $0x50] sm:$0xff]
      %v247 = vld [vmem:[%s2 + $0x58] sm:$0xff]
      %v248 = vld [vmem:[%s2 + $0x60] sm:$0xff]
      %v249 = vld [vmem:[%s2 + $0x68] sm:$0xff]
      %v250 = vld [vmem:[%s2 + $0x70] sm:$0xff]
      %v251 = vld [vmem:[%s2 + $0x78] sm:$0xff]
      %v252 = vld [vmem:[%s192] sm:$0xff]
      %254 = vset.pattern.permute.xlu0 0
      %255 = vperm.xlu0 %254, %v236
      %v256 = vpop.permute.xlu0 %255
      %259 = vset.pattern.permute.xlu0 0
      %260 = vperm.xlu0 %259, %v237
      %v261 = vpop.permute.xlu0 %260
      %264 = vset.pattern.permute.xlu0 0
      %265 = vperm.xlu0 %264, %v238
      %v266 = vpop.permute.xlu0 %265
      %269 = vset.pattern.permute.xlu0 0
      %270 = vperm.xlu0 %269, %v239
      %v271 = vpop.permute.xlu0 %270
      %274 = vset.pattern.permute.xlu0 0
      %275 = vperm.xlu0 %274, %v240
      %v276 = vpop.permute.xlu0 %275
      %279 = vset.pattern.permute.xlu0 0
      %280 = vperm.xlu0 %279, %v241
      %v281 = vpop.permute.xlu0 %280
      %284 = vset.pattern.permute.xlu0 0
      %285 = vperm.xlu0 %284, %v242
      %v286 = vpop.permute.xlu0 %285
      %289 = vset.pattern.permute.xlu0 0
      %290 = vperm.xlu0 %289, %v243
      %v291 = vpop.permute.xlu0 %290
      %294 = vset.pattern.permute.xlu0 0
      %295 = vperm.xlu0 %294, %v244
      %v296 = vpop.permute.xlu0 %295
      %299 = vset.pattern.permute.xlu0 0
      %300 = vperm.xlu0 %299, %v245
      %v301 = vpop.permute.xlu0 %300
      %304 = vset.pattern.permute.xlu0 0
      %305 = vperm.xlu0 %304, %v246
      %v306 = vpop.permute.xlu0 %305
      %309 = vset.pattern.permute.xlu0 0
      %310 = vperm.xlu0 %309, %v247
      %v311 = vpop.permute.xlu0 %310
      %314 = vset.pattern.permute.xlu0 0
      %315 = vperm.xlu0 %314, %v248
      %v316 = vpop.permute.xlu0 %315
      %319 = vset.pattern.permute.xlu0 0
      %320 = vperm.xlu0 %319, %v249
      %v321 = vpop.permute.xlu0 %320
      %324 = vset.pattern.permute.xlu0 0
      %325 = vperm.xlu0 %324, %v250
      %v326 = vpop.permute.xlu0 %325
      %329 = vset.pattern.permute.xlu0 0
      %330 = vperm.xlu0 %329, %v251
      %v331 = vpop.permute.xlu0 %330
      %v334 = vcombine.high %v252, %v252
      %vm335 = vcmask 31744
      %v337 = vsel %vm335, %v220, 0
      %v340 = vsel %vm335, %v221, 0
      %v343 = vsel %vm335, %v222, 0
      %v346 = vsel %vm335, %v223, 0
      %v349 = vsel %vm335, %v224, 0
      %v352 = vsel %vm335, %v225, 0
      %v355 = vsel %vm335, %v226, 0
      %v358 = vsel %vm335, %v227, 0
      %v361 = vsel %vm335, %v228, 0
      %v364 = vsel %vm335, %v229, 0
      %v367 = vsel %vm335, %v230, 0
      %v370 = vsel %vm335, %v231, 0
      %v373 = vsel %vm335, %v232, 0
      %v376 = vsel %vm335, %v233, 0
      %v379 = vsel %vm335, %v234, 0
      %v382 = vsel %vm335, %v235, 0
      %vm384 = vcmask 1043456
      %v385 = vsel %vm384, %v252, 0
      %v387 = vsel %vm384, %v334, 0
      %389 = vmatprep.subr.mxu0 %v387
      %390 = vmatpush1.msra.mxu0 %v385
      %391 = vmatprep.subr.mxu0 0.0
      %392 = vmatpush1.msra.mxu0 0.0
      %393 = vmatprep.subr.mxu0 0.0
      %394 = vmatpush1.msra.mxu0 0.0
      %395 = vmatprep.subr.mxu0 0.0
      %396 = vmatpush1.msra.mxu0 0.0
      %397 = vmatprep.subr.mxu0 0.0
      %398 = vmatpush1.msra.mxu0 0.0
      %399 = vmatprep.subr.mxu0 0.0
      %400 = vmatpush1.msra.mxu0 0.0
      %401 = vmatprep.subr.mxu0 0.0
      %402 = vmatpush1.msra.mxu0 0.0
      %403 = vmatprep.subr.mxu0 0.0
      %404 = vmatpush1.msra.mxu0 0.0
      %405 = vmatprep.subr.mxu0 0.0
      %406 = vmatpush1.msra.mxu0 0.0
      %407 = vmatprep.subr.mxu0 0.0
      %408 = vmatpush1.msra.mxu0 0.0
      %409 = vmatprep.subr.mxu0 0.0
      %410 = vmatpush1.msra.mxu0 0.0
      %411 = vmatprep.subr.mxu0 0.0
      %412 = vmatpush1.msra.mxu0 0.0
      %413 = vmatprep.subr.mxu0 0.0
      %414 = vmatpush1.msra.mxu0 0.0
      %415 = vmatprep.subr.mxu0 0.0
      %416 = vmatpush1.msra.mxu0 0.0
      %417 = vmatprep.subr.mxu0 0.0
      %418 = vmatpush1.msra.mxu0 0.0
      %419 = vmatprep.subr.mxu0 0.0
      %420 = vmatpush1.msra.mxu0 0.0
      %421 = vmatprep.subr.mxu0 0.0
      %422 = vmatpush1.msra.mxu0 0.0
      %423 = vmatprep.subr.mxu0 0.0
      %424 = vmatpush1.msra.mxu0 0.0
      %425 = vmatprep.subr.mxu0 0.0
      %426 = vmatpush1.msra.mxu0 0.0
      %427 = vmatprep.subr.mxu0 0.0
      %428 = vmatpush1.msra.mxu0 0.0
      %429 = vmatprep.subr.mxu0 0.0
      %430 = vmatpush1.msra.mxu0 0.0
      %431 = vmatprep.subr.mxu0 0.0
      %432 = vmatpush1.msra.mxu0 0.0
      %433 = vmatprep.subr.mxu0 0.0
      %434 = vmatpush1.msra.mxu0 0.0
      %435 = vmatprep.subr.mxu0 0.0
      %436 = vmatpush1.msra.mxu0 0.0
      %437 = vmatprep.subr.mxu0 0.0
      %438 = vmatpush1.msra.mxu0 0.0
      %439 = vmatprep.subr.mxu0 0.0
      %440 = vmatpush1.msra.mxu0 0.0
      %441 = vmatprep.subr.mxu0 0.0
      %442 = vmatpush1.msra.mxu0 0.0
      %443 = vmatprep.subr.mxu0 0.0
      %444 = vmatpush1.msra.mxu0 0.0
      %445 = vmatprep.subr.mxu0 0.0
      %446 = vmatpush1.msra.mxu0 0.0
      %447 = vmatprep.subr.mxu0 0.0
      %448 = vmatpush1.msra.mxu0 0.0
      %449 = vmatprep.subr.mxu0 0.0
      %450 = vmatpush1.msra.mxu0 0.0
      %451 = vmatprep.subr.mxu0 0.0
      %452 = vmatpush1.msra.mxu0 0.0
      %453 = vmatprep.mubr.f32.mxu0 0.0
      %454 = vmatmul.mubr.f32.gmra.mrb[0].mxu0 %v337
      %v455 = vpop.f32.mrb[0].mxu0
      %v456 = vadd.f32 %v256, %v455
      %v457 = vpop.f32.mrb[0].mxu0
      %v458 = vadd.f32 %v256, %v457
      %459 = vmatprep.mubr.f32.mxu0 0.0
      %460 = vmatmul.mubr.f32.gmra.mrb[0].mxu0 %v340
      %v461 = vpop.f32.mrb[0].mxu0
      %v462 = vadd.f32 %v261, %v461
      %v463 = vpop.f32.mrb[0].mxu0
      %v464 = vadd.f32 %v261, %v463
      %465 = vmatprep.mubr.f32.mxu0 0.0
      %466 = vmatmul.mubr.f32.gmra.mrb[0].mxu0 %v343
      %v467 = vpop.f32.mrb[0].mxu0
      %v468 = vadd.f32 %v266, %v467
      %v469 = vpop.f32.mrb[0].mxu0
      %v470 = vadd.f32 %v266, %v469
      %471 = vmatprep.mubr.f32.mxu0 0.0
      %472 = vmatmul.mubr.f32.gmra.mrb[0].mxu0 %v346
      %v473 = vpop.f32.mrb[0].mxu0
      %v474 = vadd.f32 %v271, %v473
      %v475 = vpop.f32.mrb[0].mxu0
      %v476 = vadd.f32 %v271, %v475
      %477 = vmatprep.mubr.f32.mxu0 0.0
      %478 = vmatmul.mubr.f32.gmra.mrb[0].mxu0 %v349
      %v479 = vpop.f32.mrb[0].mxu0
      %v480 = vadd.f32 %v276, %v479
      %v481 = vpop.f32.mrb[0].mxu0
      %v482 = vadd.f32 %v276, %v481
      %483 = vmatprep.mubr.f32.mxu0 0.0
      %484 = vmatmul.mubr.f32.gmra.mrb[0].mxu0 %v352
      %v485 = vpop.f32.mrb[0].mxu0
      %v486 = vadd.f32 %v281, %v485
      %v487 = vpop.f32.mrb[0].mxu0
      %v488 = vadd.f32 %v281, %v487
      %489 = vmatprep.mubr.f32.mxu0 0.0
      %490 = vmatmul.mubr.f32.gmra.mrb[0].mxu0 %v355
      %v491 = vpop.f32.mrb[0].mxu0
      %v492 = vadd.f32 %v286, %v491
      %v493 = vpop.f32.mrb[0].mxu0
      %v494 = vadd.f32 %v286, %v493
      %495 = vmatprep.mubr.f32.mxu0 0.0
      %496 = vmatmul.mubr.f32.gmra.mrb[0].mxu0 %v358
      %v497 = vpop.f32.mrb[0].mxu0
      %v498 = vadd.f32 %v291, %v497
      %v499 = vpop.f32.mrb[0].mxu0
      %v500 = vadd.f32 %v291, %v499
      %501 = vmatprep.mubr.f32.mxu0 0.0
      %502 = vmatmul.mubr.f32.gmra.mrb[0].mxu0 %v361
      %v503 = vpop.f32.mrb[0].mxu0
      %v504 = vadd.f32 %v296, %v503
      %v505 = vpop.f32.mrb[0].mxu0
      %v506 = vadd.f32 %v296, %v505
      %507 = vmatprep.mubr.f32.mxu0 0.0
      %508 = vmatmul.mubr.f32.gmra.mrb[0].mxu0 %v364
      %v509 = vpop.f32.mrb[0].mxu0
      %v510 = vadd.f32 %v301, %v509
      %v511 = vpop.f32.mrb[0].mxu0
      %v512 = vadd.f32 %v301, %v511
      %513 = vmatprep.mubr.f32.mxu0 0.0
      %514 = vmatmul.mubr.f32.gmra.mrb[0].mxu0 %v367
      %v515 = vpop.f32.mrb[0].mxu0
      %v516 = vadd.f32 %v306, %v515
      %v517 = vpop.f32.mrb[0].mxu0
      %v518 = vadd.f32 %v306, %v517
      %519 = vmatprep.mubr.f32.mxu0 0.0
      %520 = vmatmul.mubr.f32.gmra.mrb[0].mxu0 %v370
      %v521 = vpop.f32.mrb[0].mxu0
      %v522 = vadd.f32 %v311, %v521
      %v523 = vpop.f32.mrb[0].mxu0
      %v524 = vadd.f32 %v311, %v523
      %525 = vmatprep.mubr.f32.mxu0 0.0
      %526 = vmatmul.mubr.f32.gmra.mrb[0].mxu0 %v373
      %v527 = vpop.f32.mrb[0].mxu0
      %v528 = vadd.f32 %v316, %v527
      %v529 = vpop.f32.mrb[0].mxu0
      %v530 = vadd.f32 %v316, %v529
      %531 = vmatprep.mubr.f32.mxu0 0.0
      %532 = vmatmul.mubr.f32.gmra.mrb[0].mxu0 %v376
      %v533 = vpop.f32.mrb[0].mxu0
      %v534 = vadd.f32 %v321, %v533
      %v535 = vpop.f32.mrb[0].mxu0
      %v536 = vadd.f32 %v321, %v535
      %537 = vmatprep.mubr.f32.mxu0 0.0
      %538 = vmatmul.mubr.f32.gmra.mrb[0].mxu0 %v379
      %v539 = vpop.f32.mrb[0].mxu0
      %v540 = vadd.f32 %v326, %v539
      %v541 = vpop.f32.mrb[0].mxu0
      %v542 = vadd.f32 %v326, %v541
      %543 = vmatprep.mubr.f32.mxu0 0.0
      %544 = vmatmul.mubr.f32.gmra.mrb[0].mxu0 %v382
      %v545 = vpop.f32.mrb[0].mxu0
      %v546 = vadd.f32 %v331, %v545
      %v547 = vpop.f32.mrb[0].mxu0
      %v548 = vadd.f32 %v331, %v547
      %549 = vdwg.mxu0
      %v550 = vmax.f32 %v456, 0.0
      %v551 = vmax.f32 %v458, 0.0
      %v552 = vmax.f32 %v462, 0.0
      %v553 = vmax.f32 %v464, 0.0
      %v554 = vmax.f32 %v468, 0.0
      %v555 = vmax.f32 %v470, 0.0
      %v556 = vmax.f32 %v474, 0.0
      %v557 = vmax.f32 %v476, 0.0
      %v558 = vmax.f32 %v480, 0.0
      %v559 = vmax.f32 %v482, 0.0
      %v560 = vmax.f32 %v486, 0.0
      %v561 = vmax.f32 %v488, 0.0
      %v562 = vmax.f32 %v492, 0.0
      %v563 = vmax.f32 %v494, 0.0
      %v564 = vmax.f32 %v498, 0.0
      %v565 = vmax.f32 %v500, 0.0
      %v566 = vmax.f32 %v504, 0.0
      %v567 = vmax.f32 %v506, 0.0
      %v568 = vmax.f32 %v510, 0.0
      %v569 = vmax.f32 %v512, 0.0
      %v570 = vmax.f32 %v516, 0.0
      %v571 = vmax.f32 %v518, 0.0
      %v572 = vmax.f32 %v522, 0.0
      %v573 = vmax.f32 %v524, 0.0
      %v574 = vmax.f32 %v528, 0.0
      %v575 = vmax.f32 %v530, 0.0
      %v576 = vmax.f32 %v534, 0.0
      %v577 = vmax.f32 %v536, 0.0
      %v578 = vmax.f32 %v540, 0.0
      %v579 = vmax.f32 %v542, 0.0
      %v580 = vmax.f32 %v546, 0.0
      %v581 = vmax.f32 %v548, 0.0
      %v582 = vadd.f32 %v550, %v551
      %583 = vadd.xlane.f32.xlu0 %v582
      %v584 = vpop.xlane.xlu0 %583
      %v585 = vadd.f32 %v552, %v553
      %586 = vadd.xlane.f32.xlu0 %v585
      %v587 = vpop.xlane.xlu0 %586
      %v588 = vadd.f32 %v554, %v555
      %589 = vadd.xlane.f32.xlu0 %v588
      %v590 = vpop.xlane.xlu0 %589
      %v591 = vadd.f32 %v556, %v557
      %592 = vadd.xlane.f32.xlu0 %v591
      %v593 = vpop.xlane.xlu0 %592
      %v594 = vadd.f32 %v558, %v559
      %595 = vadd.xlane.f32.xlu0 %v594
      %v596 = vpop.xlane.xlu0 %595
      %v597 = vadd.f32 %v560, %v561
      %598 = vadd.xlane.f32.xlu0 %v597
      %v599 = vpop.xlane.xlu0 %598
      %v600 = vadd.f32 %v562, %v563
      %601 = vadd.xlane.f32.xlu0 %v600
      %v602 = vpop.xlane.xlu0 %601
      %v603 = vadd.f32 %v564, %v565
      %604 = vadd.xlane.f32.xlu0 %v603
      %v605 = vpop.xlane.xlu0 %604
      %v606 = vadd.f32 %v566, %v567
      %607 = vadd.xlane.f32.xlu0 %v606
      %v608 = vpop.xlane.xlu0 %607
      %v609 = vadd.f32 %v568, %v569
      %610 = vadd.xlane.f32.xlu0 %v609
      %v611 = vpop.xlane.xlu0 %610
      %v612 = vadd.f32 %v570, %v571
      %613 = vadd.xlane.f32.xlu0 %v612
      %v614 = vpop.xlane.xlu0 %613
      %v615 = vadd.f32 %v572, %v573
      %616 = vadd.xlane.f32.xlu0 %v615
      %v617 = vpop.xlane.xlu0 %616
      %v618 = vadd.f32 %v574, %v575
      %619 = vadd.xlane.f32.xlu0 %v618
      %v620 = vpop.xlane.xlu0 %619
      %v621 = vadd.f32 %v576, %v577
      %622 = vadd.xlane.f32.xlu0 %v621
      %v623 = vpop.xlane.xlu0 %622
      %v624 = vadd.f32 %v578, %v579
      %625 = vadd.xlane.f32.xlu0 %v624
      %v626 = vpop.xlane.xlu0 %625
      %v627 = vadd.f32 %v580, %v581
      %628 = vadd.xlane.f32.xlu0 %v627
      %v629 = vpop.xlane.xlu0 %628
      %v630 = vld [vmem:[%s198] sm:$0xff]
      %v631 = vld [vmem:[%s198 + $0x8] sm:$0xff]
      %v632 = vld [vmem:[%s198 + $0x10] sm:$0xff]
      %v633 = vld [vmem:[%s198 + $0x18] sm:$0xff]
      %v634 = vld [vmem:[%s198 + $0x20] sm:$0xff]
      %v635 = vld [vmem:[%s198 + $0x28] sm:$0xff]
      %v636 = vld [vmem:[%s198 + $0x30] sm:$0xff]
      %v637 = vld [vmem:[%s198 + $0x38] sm:$0xff]
      %v638 = vld [vmem:[%s198 + $0x40] sm:$0xff]
      %v639 = vld [vmem:[%s198 + $0x48] sm:$0xff]
      %v640 = vld [vmem:[%s198 + $0x50] sm:$0xff]
      %v641 = vld [vmem:[%s198 + $0x58] sm:$0xff]
      %v642 = vld [vmem:[%s198 + $0x60] sm:$0xff]
      %v643 = vld [vmem:[%s198 + $0x68] sm:$0xff]
      %v644 = vld [vmem:[%s198 + $0x70] sm:$0xff]
      %v645 = vld [vmem:[%s198 + $0x78] sm:$0xff]
      %v646 = vadd.f32 %v630, %v584
      %v647 = vadd.f32 %v631, %v587
      %v648 = vadd.f32 %v632, %v590
      %v649 = vadd.f32 %v633, %v593
      %v650 = vadd.f32 %v634, %v596
      %v651 = vadd.f32 %v635, %v599
      %v652 = vadd.f32 %v636, %v602
      %v653 = vadd.f32 %v637, %v605
      %v654 = vadd.f32 %v638, %v608
      %v655 = vadd.f32 %v639, %v611
      %v656 = vadd.f32 %v640, %v614
      %v657 = vadd.f32 %v641, %v617
      %v658 = vadd.f32 %v642, %v620
      %v659 = vadd.f32 %v643, %v623
      %v660 = vadd.f32 %v644, %v626
      %v661 = vadd.f32 %v645, %v629
      %vm662 = vcmask 7168
      %663 = vst.msk [vmem:[%s198] sm:$0xff] %vm662, %v646
      %664 = vst.msk [vmem:[%s198 + $0x8] sm:$0xff] %vm662, %v647
      %665 = vst.msk [vmem:[%s198 + $0x10] sm:$0xff] %vm662, %v648
      %666 = vst.msk [vmem:[%s198 + $0x18] sm:$0xff] %vm662, %v649
      %667 = vst.msk [vmem:[%s198 + $0x20] sm:$0xff] %vm662, %v650
      %668 = vst.msk [vmem:[%s198 + $0x28] sm:$0xff] %vm662, %v651
      %669 = vst.msk [vmem:[%s198 + $0x30] sm:$0xff] %vm662, %v652
      %670 = vst.msk [vmem:[%s198 + $0x38] sm:$0xff] %vm662, %v653
      %671 = vst.msk [vmem:[%s198 + $0x40] sm:$0xff] %vm662, %v654
      %672 = vst.msk [vmem:[%s198 + $0x48] sm:$0xff] %vm662, %v655
      %673 = vst.msk [vmem:[%s198 + $0x50] sm:$0xff] %vm662, %v656
      %674 = vst.msk [vmem:[%s198 + $0x58] sm:$0xff] %vm662, %v657
      %675 = vst.msk [vmem:[%s198 + $0x60] sm:$0xff] %vm662, %v658
      %676 = vst.msk [vmem:[%s198 + $0x68] sm:$0xff] %vm662, %v659
      %677 = vst.msk [vmem:[%s198 + $0x70] sm:$0xff] %vm662, %v660
      %678 = vst.msk [vmem:[%s198 + $0x78] sm:$0xff] %vm662, %v661
      %p679 = scmp.lt.s32.totalorder %s18, 1
      %s680 = scalar_select %p679, %s18, 1
      %s681 = smul.addr %s680, 16
      %s682 = smul.addr %s681, 8
      %s683 = scalar_lea.vmem %s3, %s682
      // Predicated region
      $region37: #{tpu_custom_call.1} parent=31 // pred_check
        %p684 = pneg %p114
      $region38: #{tpu_custom_call.1} parent=31 // pred_check_branch
        %686 = sbr.rel (%p684) target = $region40
      $region39: #{tpu_custom_call.1} parent=31 // pred_region
        _
      $region40: #{tpu_custom_call.1} parent=31 // pred_fallthru
        _
    $region32: #{tpu_custom_call.1} parent=5 // pred_fallthru
      _
    %p687 = scmp.le.s32.totalorder 2, %s9
    // Predicated region
    $region41: #{tpu_custom_call.1} parent=5 // pred_check
      %p688 = pneg %p687
    $region42: #{tpu_custom_call.1} parent=5 // pred_check_branch
      %690 = sbr.rel (%p688) target = $region44
    $region43: #{tpu_custom_call.1} parent=5 // pred_region
      %s691 = ssub.s32 %s9, 2
      // Predicated region
      $region45: #{tpu_custom_call.1} parent=43 // pred_check
        %p692 = pneg %p120
      $region46: #{tpu_custom_call.1} parent=43 // pred_check_branch
        %694 = sbr.rel (%p692) target = $region48
      $region47: #{tpu_custom_call.1} parent=43 // pred_region
        %p695 = scmp.lt.s32.totalorder %s20, 1
        %s696 = scalar_select %p695, %s20, 1
        %s697 = smul.addr %s696, 16
        %s698 = smul.addr %s697, 8
        %s699 = scalar_lea.vmem %s3, %s698
      $region48: #{tpu_custom_call.1} parent=43 // pred_fallthru
        _
    $region44: #{tpu_custom_call.1} parent=5 // pred_fallthru
      _
  $region6: #{tpu_custom_call.1} parent=0 // loop_footer
    %s13 = sadd.s32 1, %s9
  $region7: #{tpu_custom_call.1} parent=0 // loop_footer_branch
    %8 = sbr.rel target = $region3
  $region8: #{tpu_custom_call.1} parent=0 // loop_exit
    _

</llo_original>
